<compile_context>
chip_gen: v7x
topology: tpu7x:2x2x1
jax: 0.10.0
libtpu: 0.0.40
codegen_flags: <defaults>
</compile_context>

<pallas_src>
import math

import jax
import jax.numpy as jnp
from jax.experimental import pallas as pl
from jax.experimental.pallas import tpu as pltpu


def _round_up(x, m):
    return ((x + m - 1) // m) * m


def _sublane(dtype):
    # Rows per sublane-packed tile: 8 for 4-byte, 16 for 2-byte, 32 for 1-byte.
    return {4: 8, 2: 16, 1: 32}.get(jnp.dtype(dtype).itemsize, 8)


def _vmem_limit_bytes():
    """Generation-aware VMEM limit (64 MiB physical on v7x, 128 MiB on v5e/v6e)."""
    try:
        cap = pltpu.get_tpu_info().vmem_capacity_bytes
    except Exception:
        cap = 64 * 1024 * 1024  # assume the smallest generation if the query fails
    return int(min(100 * 1024 * 1024, cap * 3 // 4))


def _divisors_desc(n):
    ds, i = set(), 1
    while i * i <= n:
        if n % i == 0:
            ds.add(i)
            ds.add(n // i)
        i += 1
    return sorted(ds, reverse=True)


def _plan_tiles(M, d_model, d_ff, xi, wi, oi, budget, sub, tm_user, tf_user):
    """Pick (tm, tf). tf == d_ff means the resident-weights single-pass path."""
    if tm_user is not None:
        tm = _round_up(tm_user, sub)
    else:
        tm = min(1024, _round_up(max(M, 1), sub))
        if M >= 1024:
            # >=2 row tiles so v7x's two TensorCores both get work; keep 256-aligned
            # tiles so the 256-wide MXU passes stay full.
            tm = min(tm, max(256, _round_up(-(-M // 2), 256)))

    def fits_resident(t):
        return (2 * t * d_model * xi            # x tile, double-buffered
                + 2 * t * d_model * oi          # out tile, double-buffered
                + 2 * (2 * d_model * d_ff + d_ff + d_model) * wi  # w1,w2,b1,b2 (2x)
                + t * d_ff * (4 + wi)           # f32 GEMM1 result + cast copy
                ) <= budget

    def fits_tiled(t, f):
        return (2 * t * d_model * xi
                + 2 * t * d_model * oi
                + 2 * (2 * d_model * f + f + d_model) * wi
                + t * d_model * 4               # f32 accumulator scratch
                + t * f * (4 + wi)              # f32 GEMM1 result + cast copy
                ) <= budget

    if tf_user is not None:
        tf = tf_user
        if tm_user is None:
            while tm > sub and not (fits_resident(tm) if tf == d_ff
                                    else fits_tiled(tm, tf)):
                tm = max(sub, _round_up(tm // 2, sub))
        return tm, tf

    # Prefer keeping the full weights VMEM-resident: weights then leave HBM once
    # for the whole call instead of once per row tile.
    if d_ff % 128 != 0 or fits_resident(tm):
        return tm, d_ff

    divs = _divisors_desc(d_ff)
    while True:
        for align in (256, 128):                # 256-wide MXU on v6e/v7x; 128 fallback
            for t in divs:
                if t % align == 0 and fits_tiled(tm, t):
                    return tm, t
        if tm <= sub:
            break
        tm = max(sub, _round_up(tm // 2, sub))  # shrink rows only as a last resort
    tf = min([t for t in divs if t % 128 == 0], default=d_ff)
    return tm, tf


def _ffn_kernel_resident(x_ref, w1_ref, b1_ref, w2_ref, b2_ref, o_ref):
    # Single pass over d_ff: weights are fully VMEM-resident, no accumulator.
    x = x_ref[...]
    h = jnp.dot(x, w1_ref[...], preferred_element_type=jnp.float32)       # MXU
    h = jnp.maximum(h + b1_ref[...].astype(jnp.float32), 0.0)             # bias+ReLU
    # dropout (eval mode) == identity
    out = jnp.dot(h.astype(x.dtype), w2_ref[...],
                  preferred_element_type=jnp.float32)                     # MXU
    o_ref[...] = (out + b2_ref[...].astype(jnp.float32)).astype(o_ref.dtype)


def _ffn_kernel_tiled(x_ref, w1_ref, b1_ref, w2_ref, b2_ref, o_ref, acc_ref):
    # Reduction over d_ff tiles with a resident f32 accumulator.
    f = pl.program_id(1)

    @pl.when(f == 0)
    def _():
        # Seed the accumulator with b2 exactly once (bias hoisted out of the loop).
        acc_ref[...] = jnp.broadcast_to(
            b2_ref[...].astype(jnp.float32), acc_ref.shape)

    x = x_ref[...]
    h = jnp.dot(x, w1_ref[...], preferred_element_type=jnp.float32)
    h = jnp.maximum(h + b1_ref[...].astype(jnp.float32), 0.0)
    # dropout (eval mode) == identity
    acc_ref[...] += jnp.dot(h.astype(x.dtype), w2_ref[...],
                            preferred_element_type=jnp.float32)

    @pl.when(f == pl.num_programs(1) - 1)
    def _():
        o_ref[...] = acc_ref[...].astype(o_ref.dtype)


def feed_forward_block(x, w1, b1, w2, b2, *, tm=None, tf=None, compute_dtype=None):
    """x: [..., d_model] -> [..., d_model], fused FFN in one pallas_call.

    compute_dtype: optional cast of x/w1/w2 (e.g. jnp.bfloat16) for bf16-native
    MXUs; accumulation stays f32 and the output keeps x.dtype.
    """
    d_model = x.shape[-1]
    d_ff = w1.shape[-1]
    lead_shape = x.shape[:-1]
    out_dtype = x.dtype
    M = math.prod(lead_shape) if lead_shape else 1
    x2d = x.reshape(M, d_model)

    cdtype = jnp.dtype(compute_dtype) if compute_dtype is not None else jnp.dtype(x.dtype)
    if cdtype != x2d.dtype:
        x2d = x2d.astype(cdtype)
    w1c = w1.astype(cdtype) if w1.dtype != cdtype else w1
    w2c = w2.astype(cdtype) if w2.dtype != cdtype else w2

    xi = wi = cdtype.itemsize
    oi = jnp.dtype(out_dtype).itemsize
    sub = _sublane(cdtype)
    vmem_limit = _vmem_limit_bytes()

    tm, tf = _plan_tiles(M, d_model, d_ff, xi, wi, oi, vmem_limit, sub, tm, tf)
    assert d_ff % tf == 0, "tf must evenly divide d_ff (reduction tiles may not be padded)"
    resident = (tf == d_ff)

    # Pad rows so tm divides evenly; padded rows are zeros and sliced off below.
    M_pad = _round_up(M, tm)
    if M_pad != M:
        x2d = jnp.pad(x2d, ((0, M_pad - M), (0, 0)))

    b1_2d = b1.reshape(1, d_ff)
    b2_2d = b2.reshape(1, d_model)

    n_row = M_pad // tm
    weight_reads = 1 if resident else n_row   # weights re-streamed once per row tile
    cost = pl.CostEstimate(
        flops=4 * M_pad * d_model * d_ff,     # two GEMMs, 2*M_pad*d_model*d_ff each
        transcendentals=0,
        bytes_accessed=(x2d.size * xi + M_pad * d_model * oi
                        + weight_reads * (w1c.size + w2c.size) * wi
                        + (b1_2d.size + b2_2d.size) * jnp.dtype(b1.dtype).itemsize),
    )

    if resident:
        # TODO(synk): pltpu.CORE_PARALLEL on the row axis could be forced for v7x;
        # "parallel" is portable across generations so we keep it here.
        grid_spec = pltpu.PrefetchScalarGridSpec(
            num_scalar_prefetch=0,
            grid=(n_row,),
            in_specs=[
                pl.BlockSpec((tm, d_model), lambda i: (i, 0)),
                pl.BlockSpec((d_model, d_ff), lambda i: (0, 0)),   # DMA'd once
                pl.BlockSpec((1, d_ff), lambda i: (0, 0)),
                pl.BlockSpec((d_ff, d_model), lambda i: (0, 0)),   # DMA'd once
                pl.BlockSpec((1, d_model), lambda i: (0, 0)),
            ],
            out_specs=pl.BlockSpec((tm, d_model), lambda i: (i, 0)),
        )
        kernel = _ffn_kernel_resident
        dims = ("parallel",)
    else:
        grid_spec = pltpu.PrefetchScalarGridSpec(
            num_scalar_prefetch=0,
            grid=(n_row, d_ff // tf),
            in_specs=[
                pl.BlockSpec((tm, d_model), lambda i, f: (i, 0)),
                pl.BlockSpec((d_model, tf), lambda i, f: (0, f)),
                pl.BlockSpec((1, tf), lambda i, f: (0, f)),
                pl.BlockSpec((tf, d_model), lambda i, f: (f, 0)),
                pl.BlockSpec((1, d_model), lambda i, f: (0, 0)),
            ],
            out_specs=pl.BlockSpec((tm, d_model), lambda i, f: (i, 0)),
            scratch_shapes=[pltpu.VMEM((tm, d_model), jnp.float32)],
        )
        kernel = _ffn_kernel_tiled
        dims = ("parallel", "arbitrary")

    out = pl.pallas_call(
        kernel,
        out_shape=jax.ShapeDtypeStruct((M_pad, d_model), out_dtype),
        grid_spec=grid_spec,
        compiler_params=pltpu.CompilerParams(
            dimension_semantics=dims,
            vmem_limit_bytes=vmem_limit,
        ),
        cost_estimate=cost,
    )(x2d, w1c, b1_2d, w2c, b2_2d)

    out = out[:M]
    return out.reshape(*lead_shape, d_model)


def init_params(key, d_model, d_ff, dtype=jnp.float32):
    """Deterministic init mimicking nn.Linear's uniform(-1/sqrt(fan_in), +)."""
    k1, k2, k3, k4 = jax.random.split(key, 4)
    lim1 = 1.0 / (d_model ** 0.5)
    lim2 = 1.0 / (d_ff ** 0.5)
    # Stored already-transposed: w1:[d_model, d_ff], w2:[d_ff, d_model]
    w1 = jax.random.uniform(k1, (d_model, d_ff), dtype, -lim1, lim1)
    b1 = jax.random.uniform(k2, (d_ff,), dtype, -lim1, lim1)
    w2 = jax.random.uniform(k3, (d_ff, d_model), dtype, -lim2, lim2)
    b2 = jax.random.uniform(k4, (d_model,), dtype, -lim2, lim2)
    return w1, b1, w2, b2


def _reference(x, w1, b1, w2, b2):
    h = jnp.maximum(x @ w1 + b1, 0.0)
    return h @ w2 + b2


if __name__ == "__main__":
    key = jax.random.PRNGKey(0)
    kx, kp, k2 = jax.random.split(key, 3)

    # --- test 1: toy config matching the torch module spec (resident-weights path) ---
    batch, seq, d_model, d_ff = 2, 8, 32, 64
    x = jax.random.normal(kx, (batch, seq, d_model), dtype=jnp.float32)
    w1, b1, w2, b2 = init_params(kp, d_model, d_ff)
    y = jax.block_until_ready(feed_forward_block(x, w1, b1, w2, b2))
    y_ref = _reference(x, w1, b1, w2, b2)
    assert y.shape == (batch, seq, d_model)
    assert jnp.allclose(y, y_ref, atol=1e-5, rtol=1e-5)

    # --- test 2: non-divisible M (padding path) + multi-row-tile grid ---
    x2 = jax.random.normal(k2, (3, 5, d_model), dtype=jnp.float32)
    y2 = jax.block_until_ready(feed_forward_block(x2, w1, b1, w2, b2, tm=8))
    assert jnp.allclose(y2, _reference(x2, w1, b1, w2, b2), atol=1e-5, rtol=1e-5)

    # --- test 3: lane-dense config exercising the tiled d_ff reduction path ---
    d_model3, d_ff3 = 128, 256
    kx3, kp3 = jax.random.split(k2)
    x3 = jax.random.normal(kx3, (2, 16, d_model3), dtype=jnp.float32)
    p3 = init_params(kp3, d_model3, d_ff3)
    y3 = jax.block_until_ready(feed_forward_block(x3, *p3, tf=128))
    # Looser tolerance: accumulation over the split d_ff axis differs in order
    # from the single-dot reference.
    assert jnp.allclose(y3, _reference(x3, *p3), atol=2e-2, rtol=2e-2)

    # --- test 4: opt-in bf16 compute path (f32 in/out, bf16 MXU, f32 accumulate) ---
    y4 = jax.block_until_ready(
        feed_forward_block(x, w1, b1, w2, b2, compute_dtype=jnp.bfloat16))
    assert y4.dtype == x.dtype
    assert jnp.allclose(y4, y_ref, atol=5e-2, rtol=5e-2)

    print("KERNEL_OK")
</pallas_src>

<mosaic_0001>
module attributes {stable_mosaic.version = 11 : i64} {
  func.func @_ffn_kernel_resident(%arg0: i32, %arg1: memref<16x32xf32, #tpu.memory_space<vmem>>, %arg2: memref<32x64xf32, #tpu.memory_space<vmem>>, %arg3: memref<1x64xf32, #tpu.memory_space<vmem>>, %arg4: memref<64x32xf32, #tpu.memory_space<vmem>>, %arg5: memref<1x32xf32, #tpu.memory_space<vmem>>, %arg6: memref<16x32xf32, #tpu.memory_space<vmem>>) attributes {dimension_semantics = [#tpu.dimension_semantics<parallel>], iteration_bounds = array<i64: 1>, scalar_prefetch = 0 : i64, scratch_operands = 0 : i64, tpu.core_type = #tpu.core_type<tc>, window_params = [{transform_indices = @transform_0, window_bounds = array<i64: 16, 32>}, {pipeline_mode = #tpu.pipeline_mode<synchronous>, transform_indices = @transform_1, window_bounds = array<i64: 32, 64>}, {pipeline_mode = #tpu.pipeline_mode<synchronous>, transform_indices = @transform_2, window_bounds = array<i64: 1, 64>}, {pipeline_mode = #tpu.pipeline_mode<synchronous>, transform_indices = @transform_3, window_bounds = array<i64: 64, 32>}, {pipeline_mode = #tpu.pipeline_mode<synchronous>, transform_indices = @transform_4, window_bounds = array<i64: 1, 32>}, {transform_indices = @transform_5, window_bounds = array<i64: 16, 32>}]} {
    %c0 = arith.constant 0 : index
    %c0_0 = arith.constant 0 : index
    %0 = vector.load %arg1[%c0, %c0_0] : memref<16x32xf32, #tpu.memory_space<vmem>>, vector<16x32xf32>
    %c0_1 = arith.constant 0 : index
    %c0_2 = arith.constant 0 : index
    %1 = vector.load %arg2[%c0_1, %c0_2] : memref<32x64xf32, #tpu.memory_space<vmem>>, vector<32x64xf32>
    %cst = arith.constant dense<0.000000e+00> : vector<16x64xf32>
    %2 = tpu.matmul %0, %1, %cst {dimension_numbers = #tpu.dot_dimension_numbers<[1], [0], [0], [1], [0, 0, 1, 1], [], []>} : vector<16x32xf32>, vector<32x64xf32>, vector<16x64xf32> -> vector<16x64xf32>
    %c0_3 = arith.constant 0 : index
    %c0_4 = arith.constant 0 : index
    %3 = vector.load %arg3[%c0_3, %c0_4] : memref<1x64xf32, #tpu.memory_space<vmem>>, vector<1x64xf32>
    %4 = vector.broadcast %3 : vector<1x64xf32> to vector<16x64xf32>
    %5 = arith.addf %2, %4 : vector<16x64xf32>
    %cst_5 = arith.constant 0.000000e+00 : f32
    %6 = vector.broadcast %cst_5 : f32 to vector<16x64xf32>
    %7 = arith.maximumf %5, %6 : vector<16x64xf32>
    %c0_6 = arith.constant 0 : index
    %c0_7 = arith.constant 0 : index
    %8 = vector.load %arg4[%c0_6, %c0_7] : memref<64x32xf32, #tpu.memory_space<vmem>>, vector<64x32xf32>
    %cst_8 = arith.constant dense<0.000000e+00> : vector<16x32xf32>
    %9 = tpu.matmul %7, %8, %cst_8 {dimension_numbers = #tpu.dot_dimension_numbers<[1], [0], [0], [1], [0, 0, 1, 1], [], []>} : vector<16x64xf32>, vector<64x32xf32>, vector<16x32xf32> -> vector<16x32xf32>
    %c0_9 = arith.constant 0 : index
    %c0_10 = arith.constant 0 : index
    %10 = vector.load %arg5[%c0_9, %c0_10] : memref<1x32xf32, #tpu.memory_space<vmem>>, vector<1x32xf32>
    %11 = vector.broadcast %10 : vector<1x32xf32> to vector<16x32xf32>
    %12 = arith.addf %9, %11 : vector<16x32xf32>
    %c0_11 = arith.constant 0 : index
    %c0_12 = arith.constant 0 : index
    %13 = vector.load %arg6[%c0_11, %c0_12] : memref<16x32xf32, #tpu.memory_space<vmem>>, vector<16x32xf32>
    tpu.vector_store %arg6[%c0_11, %c0_12], %12 {strides = array<i32>} : memref<16x32xf32, #tpu.memory_space<vmem>>, vector<16x32xf32>,
    return
  }
  func.func @transform_0(%arg0: i32) -> (i32, i32) {
    %c0_i32 = arith.constant 0 : i32
    %c0_i32_0 = arith.constant 0 : i32
    return %arg0, %c0_i32 : i32, i32
  }
  func.func @transform_1(%arg0: i32) -> (i32, i32) {
    %c0_i32 = arith.constant 0 : i32
    %c0_i32_0 = arith.constant 0 : i32
    %c0_i32_1 = arith.constant 0 : i32
    return %c0_i32, %c0_i32_0 : i32, i32
  }
  func.func @transform_2(%arg0: i32) -> (i32, i32) {
    %c0_i32 = arith.constant 0 : i32
    %c0_i32_0 = arith.constant 0 : i32
    %c0_i32_1 = arith.constant 0 : i32
    return %c0_i32, %c0_i32_0 : i32, i32
  }
  func.func @transform_3(%arg0: i32) -> (i32, i32) {
    %c0_i32 = arith.constant 0 : i32
    %c0_i32_0 = arith.constant 0 : i32
    %c0_i32_1 = arith.constant 0 : i32
    return %c0_i32, %c0_i32_0 : i32, i32
  }
  func.func @transform_4(%arg0: i32) -> (i32, i32) {
    %c0_i32 = arith.constant 0 : i32
    %c0_i32_0 = arith.constant 0 : i32
    %c0_i32_1 = arith.constant 0 : i32
    return %c0_i32, %c0_i32_0 : i32, i32
  }
  func.func @transform_5(%arg0: i32) -> (i32, i32) {
    %c0_i32 = arith.constant 0 : i32
    %c0_i32_0 = arith.constant 0 : i32
    return %arg0, %c0_i32 : i32, i32
  }
}

</mosaic_0001>

<llo_original>
// kernel: tpu_custom_call.1
$region0: #{tpu_custom_call.1}
  #allocation0 [shape = 'u32[]', space=smem, size = 0x4, offset = 0x4, fixed_abs, tag = 'smem constant byte address 0x4 - core index']
  #allocation1 [shape = 'u32[144,128]{1,0:T(1,128)}', space=vmem, size = 0x12000, scoped, tag = 'internal scratch']
  %s0 = inlined_call_operand.vmem [shape: f32[16,32], index: 0, kind: input, shape index: {}]
  %s1 = inlined_call_operand.vmem [shape: f32[32,64], index: 1, kind: input, shape index: {}]
  %s2 = inlined_call_operand.vmem [shape: f32[1,64], index: 2, kind: input, shape index: {}]
  %s3 = inlined_call_operand.vmem [shape: f32[64,32], index: 3, kind: input, shape index: {}]
  %s4 = inlined_call_operand.vmem [shape: f32[1,32], index: 4, kind: input, shape index: {}]
  %s5 = inlined_call_operand.hbm [shape: f32[16,32], index: 5, kind: output, shape index: {}]
  %s6 = sld [smem:[#allocation0]]
  $region30: #{tpu_custom_call.1} parent=0
    _
  %s8 = ssub.s32 1, %s6
  %s9 = scalar_select 0, %s8, %s6
  $region1: #{tpu_custom_call.1} parent=0
    #allocation2 [shape = 'u8[8192]{0}', space=vmem, size = 0x2000, scoped, tag = 'output window, operand 0, single buffered']
    #allocation3 [shape = 's32[1]{0}', space=sflag, size = 0x4, scoped, tag = 'scoped memory for tpu_custom_call.1']
    %10 = vsyncpa [#allocation3], 0
    // Predicated region
    $region2: #{tpu_custom_call.1} parent=1 // pred_check
      _
    $region3: #{tpu_custom_call.1} parent=1 // pred_check_branch
      %12 = sbr.rel (0) target = $region5
    $region4: #{tpu_custom_call.1} parent=1 // pred_region
      _
    $region5: #{tpu_custom_call.1} parent=1 // pred_fallthru
      _
    // Predicated region
    $region6: #{tpu_custom_call.1} parent=1 // pred_check
      _
    $region7: #{tpu_custom_call.1} parent=1 // pred_check_branch
      %14 = sbr.rel (0) target = $region9
    $region8: #{tpu_custom_call.1} parent=1 // pred_region
      _
    $region9: #{tpu_custom_call.1} parent=1 // pred_fallthru
      _
    // Predicated region
    $region10: #{tpu_custom_call.1} parent=1 // pred_check
      _
    $region11: #{tpu_custom_call.1} parent=1 // pred_check_branch
      %16 = sbr.rel (0) target = $region13
    $region12: #{tpu_custom_call.1} parent=1 // pred_region
      _
    $region13: #{tpu_custom_call.1} parent=1 // pred_fallthru
      _
    // Predicated region
    $region14: #{tpu_custom_call.1} parent=1 // pred_check
      _
    $region15: #{tpu_custom_call.1} parent=1 // pred_check_branch
      %18 = sbr.rel (0) target = $region17
    $region16: #{tpu_custom_call.1} parent=1 // pred_region
      _
    $region17: #{tpu_custom_call.1} parent=1 // pred_fallthru
      _
    // Predicated region
    $region18: #{tpu_custom_call.1} parent=1 // pred_check
      _
    $region19: #{tpu_custom_call.1} parent=1 // pred_check_branch
      %20 = sbr.rel (0) target = $region21
    $region20: #{tpu_custom_call.1} parent=1 // pred_region
      _
    $region21: #{tpu_custom_call.1} parent=1 // pred_fallthru
      _
    %v21 = vld [vmem:[%s0] sm:$0xff]
    %v22 = vld [vmem:[%s0 + $0x8] sm:$0xff]
    %v23 = vld [vmem:[%s1] sm:$0xff]
    %v24 = vld [vmem:[%s1 + $0x8] sm:$0xff]
    %v25 = vld [vmem:[%s1 + $0x10] sm:$0xff]
    %v26 = vld [vmem:[%s1 + $0x18] sm:$0xff]
    %v27 = vld [vmem:[%s2] sm:$0x1]
    %v29 = vlaneseq
    %v30 = vshrl.u32 %v29, 7
    %v31 = vsub.s32 0, %v30
    %v32 = vrot.slane %v27, %v31
    %vm34 = vcmask 261120
    %v36 = vsel %vm34, %v21, 0
    %v39 = vsel %vm34, %v22, 0
    %41 = vmatprep.subr.mxu0 0.0
    %42 = vmatpush1.msra.mxu0 %v23
    %43 = vmatprep.subr.mxu0 0.0
    %44 = vmatpush1.msra.mxu0 %v24
    %45 = vmatprep.subr.mxu0 0.0
    %46 = vmatpush1.msra.mxu0 %v25
    %47 = vmatprep.subr.mxu0 0.0
    %48 = vmatpush1.msra.mxu0 %v26
    %49 = vmatprep.subr.mxu0 0.0
    %50 = vmatpush1.msra.mxu0 0.0
    %51 = vmatprep.subr.mxu0 0.0
    %52 = vmatpush1.msra.mxu0 0.0
    %53 = vmatprep.subr.mxu0 0.0
    %54 = vmatpush1.msra.mxu0 0.0
    %55 = vmatprep.subr.mxu0 0.0
    %56 = vmatpush1.msra.mxu0 0.0
    %57 = vmatprep.subr.mxu0 0.0
    %58 = vmatpush1.msra.mxu0 0.0
    %59 = vmatprep.subr.mxu0 0.0
    %60 = vmatpush1.msra.mxu0 0.0
    %61 = vmatprep.subr.mxu0 0.0
    %62 = vmatpush1.msra.mxu0 0.0
    %63 = vmatprep.subr.mxu0 0.0
    %64 = vmatpush1.msra.mxu0 0.0
    %65 = vmatprep.subr.mxu0 0.0
    %66 = vmatpush1.msra.mxu0 0.0
    %67 = vmatprep.subr.mxu0 0.0
    %68 = vmatpush1.msra.mxu0 0.0
    %69 = vmatprep.subr.mxu0 0.0
    %70 = vmatpush1.msra.mxu0 0.0
    %71 = vmatprep.subr.mxu0 0.0
    %72 = vmatpush1.msra.mxu0 0.0
    %73 = vmatprep.subr.mxu0 0.0
    %74 = vmatpush1.msra.mxu0 0.0
    %75 = vmatprep.subr.mxu0 0.0
    %76 = vmatpush1.msra.mxu0 0.0
    %77 = vmatprep.subr.mxu0 0.0
    %78 = vmatpush1.msra.mxu0 0.0
    %79 = vmatprep.subr.mxu0 0.0
    %80 = vmatpush1.msra.mxu0 0.0
    %81 = vmatprep.subr.mxu0 0.0
    %82 = vmatpush1.msra.mxu0 0.0
    %83 = vmatprep.subr.mxu0 0.0
    %84 = vmatpush1.msra.mxu0 0.0
    %85 = vmatprep.subr.mxu0 0.0
    %86 = vmatpush1.msra.mxu0 0.0
    %87 = vmatprep.subr.mxu0 0.0
    %88 = vmatpush1.msra.mxu0 0.0
    %89 = vmatprep.subr.mxu0 0.0
    %90 = vmatpush1.msra.mxu0 0.0
    %91 = vmatprep.subr.mxu0 0.0
    %92 = vmatpush1.msra.mxu0 0.0
    %93 = vmatprep.subr.mxu0 0.0
    %94 = vmatpush1.msra.mxu0 0.0
    %95 = vmatprep.subr.mxu0 0.0
    %96 = vmatpush1.msra.mxu0 0.0
    %97 = vmatprep.subr.mxu0 0.0
    %98 = vmatpush1.msra.mxu0 0.0
    %99 = vmatprep.subr.mxu0 0.0
    %100 = vmatpush1.msra.mxu0 0.0
    %101 = vmatprep.subr.mxu0 0.0
    %102 = vmatpush1.msra.mxu0 0.0
    %103 = vmatprep.subr.mxu0 0.0
    %104 = vmatpush1.msra.mxu0 0.0
    %105 = vmatprep.mubr.f32.mxu0 0.0
    %106 = vmatmul.mubr.f32.gmra.mrb[0].mxu0 %v36
    %v107 = vpop.f32.mrb[0].mxu0
    %v108 = vadd.f32 %v32, %v107
    %v109 = vpop.f32.mrb[0].mxu0
    %110 = vmatprep.mubr.f32.mxu0 0.0
    %111 = vmatmul.mubr.f32.gmra.mrb[0].mxu0 %v39
    %v112 = vpop.f32.mrb[0].mxu0
    %v113 = vadd.f32 %v32, %v112
    %v114 = vpop.f32.mrb[0].mxu0
    %115 = vdwg.mxu0
    %v116 = vmax.f32 %v108, 0.0
    %v117 = vmax.f32 %v113, 0.0
    %v118 = vld [vmem:[%s3] sm:$0xff]
    %v119 = vld [vmem:[%s3 + $0x8] sm:$0xff]
    %v120 = vld [vmem:[%s3 + $0x10] sm:$0xff]
    %v121 = vld [vmem:[%s3 + $0x18] sm:$0xff]
    %v122 = vld [vmem:[%s3 + $0x20] sm:$0xff]
    %v123 = vld [vmem:[%s3 + $0x28] sm:$0xff]
    %v124 = vld [vmem:[%s3 + $0x30] sm:$0xff]
    %v125 = vld [vmem:[%s3 + $0x38] sm:$0xff]
    %v126 = vld [vmem:[%s4] sm:$0x1]
    %v128 = vlaneseq
    %v129 = vshrl.u32 %v128, 7
    %v130 = vsub.s32 0, %v129
    %v131 = vrot.slane %v126, %v130
    %vm133 = vcmask 523264
    %v135 = vsel %vm133, %v116, 0
    %v138 = vsel %vm133, %v117, 0
    %140 = vmatprep.subr.mxu0 0.0
    %141 = vmatpush1.msra.mxu0 %v118
    %142 = vmatprep.subr.mxu0 0.0
    %143 = vmatpush1.msra.mxu0 %v119
    %144 = vmatprep.subr.mxu0 0.0
    %145 = vmatpush1.msra.mxu0 %v120
    %146 = vmatprep.subr.mxu0 0.0
    %147 = vmatpush1.msra.mxu0 %v121
    %148 = vmatprep.subr.mxu0 0.0
    %149 = vmatpush1.msra.mxu0 %v122
    %150 = vmatprep.subr.mxu0 0.0
    %151 = vmatpush1.msra.mxu0 %v123
    %152 = vmatprep.subr.mxu0 0.0
    %153 = vmatpush1.msra.mxu0 %v124
    %154 = vmatprep.subr.mxu0 0.0
    %155 = vmatpush1.msra.mxu0 %v125
    %156 = vmatprep.subr.mxu0 0.0
    %157 = vmatpush1.msra.mxu0 0.0
    %158 = vmatprep.subr.mxu0 0.0
    %159 = vmatpush1.msra.mxu0 0.0
    %160 = vmatprep.subr.mxu0 0.0
    %161 = vmatpush1.msra.mxu0 0.0
    %162 = vmatprep.subr.mxu0 0.0
    %163 = vmatpush1.msra.mxu0 0.0
    %164 = vmatprep.subr.mxu0 0.0
    %165 = vmatpush1.msra.mxu0 0.0
    %166 = vmatprep.subr.mxu0 0.0
    %167 = vmatpush1.msra.mxu0 0.0
    %168 = vmatprep.subr.mxu0 0.0
    %169 = vmatpush1.msra.mxu0 0.0
    %170 = vmatprep.subr.mxu0 0.0
    %171 = vmatpush1.msra.mxu0 0.0
    %172 = vmatprep.subr.mxu0 0.0
    %173 = vmatpush1.msra.mxu0 0.0
    %174 = vmatprep.subr.mxu0 0.0
    %175 = vmatpush1.msra.mxu0 0.0
    %176 = vmatprep.subr.mxu0 0.0
    %177 = vmatpush1.msra.mxu0 0.0
    %178 = vmatprep.subr.mxu0 0.0
    %179 = vmatpush1.msra.mxu0 0.0
    %180 = vmatprep.subr.mxu0 0.0
    %181 = vmatpush1.msra.mxu0 0.0
    %182 = vmatprep.subr.mxu0 0.0
    %183 = vmatpush1.msra.mxu0 0.0
    %184 = vmatprep.subr.mxu0 0.0
    %185 = vmatpush1.msra.mxu0 0.0
    %186 = vmatprep.subr.mxu0 0.0
    %187 = vmatpush1.msra.mxu0 0.0
    %188 = vmatprep.subr.mxu0 0.0
    %189 = vmatpush1.msra.mxu0 0.0
    %190 = vmatprep.subr.mxu0 0.0
    %191 = vmatpush1.msra.mxu0 0.0
    %192 = vmatprep.subr.mxu0 0.0
    %193 = vmatpush1.msra.mxu0 0.0
    %194 = vmatprep.subr.mxu0 0.0
    %195 = vmatpush1.msra.mxu0 0.0
    %196 = vmatprep.subr.mxu0 0.0
    %197 = vmatpush1.msra.mxu0 0.0
    %198 = vmatprep.subr.mxu0 0.0
    %199 = vmatpush1.msra.mxu0 0.0
    %200 = vmatprep.subr.mxu0 0.0
    %201 = vmatpush1.msra.mxu0 0.0
    %202 = vmatprep.subr.mxu0 0.0
    %203 = vmatpush1.msra.mxu0 0.0
    %204 = vmatprep.mubr.f32.mxu0 0.0
    %205 = vmatmul.mubr.f32.gmra.mrb[0].mxu0 %v135
    %v206 = vpop.f32.mrb[0].mxu0
    %v207 = vadd.f32 %v131, %v206
    %v208 = vpop.f32.mrb[0].mxu0
    %209 = vmatprep.mubr.f32.mxu0 0.0
    %210 = vmatmul.mubr.f32.gmra.mrb[0].mxu0 %v138
    %v211 = vpop.f32.mrb[0].mxu0
    %v212 = vadd.f32 %v131, %v211
    %v213 = vpop.f32.mrb[0].mxu0
    %214 = vdwg.mxu0
    %215 = vst.msk [vmem:[#allocation2] sm:$0xff] %vm34, %v207
    %216 = vst.msk [vmem:[#allocation2 + $0x8] sm:$0xff] %vm34, %v212
    // Predicated region
    $region22: #{tpu_custom_call.1} parent=1 // pred_check
      _
    $region23: #{tpu_custom_call.1} parent=1 // pred_check_branch
      %218 = sbr.rel (0) target = $region25
    $region24: #{tpu_custom_call.1} parent=1 // pred_region
      %s220 = ssub.s32 256, 256
      %221 = vsyncadd [#allocation3], %s220
      %s222 = sshll.u32 [#allocation2], 4
      %s223 = int_to_ptr.vmem [resolvable:$true] %s222
      %228 = dma.vmem_to_hbm [thread:$0]  %s223, 256, %s5, [#allocation3], 128, 128, 8
    $region25: #{tpu_custom_call.1} parent=1 // pred_fallthru
      _
    // Predicated region
    $region26: #{tpu_custom_call.1} parent=1 // pred_check
      _
    $region27: #{tpu_custom_call.1} parent=1 // pred_check_branch
      %230 = sbr.rel (0) target = $region29
    $region28: #{tpu_custom_call.1} parent=1 // pred_region
      %231 = dma.done [#allocation3], 256
    $region29: #{tpu_custom_call.1} parent=1 // pred_fallthru
      _
    %232 = vsyncpa [#allocation3], 1

</llo_original>
